<compile_context>
chip_gen: v7x
topology: tpu7x:2x2x1
jax: 0.10.0
libtpu: 0.0.40
codegen_flags: <defaults>
</compile_context>

<pallas_src>
import jax
import jax.numpy as jnp
from jax.experimental import pallas as pl
from jax.experimental.pallas import tpu as pltpu

F_IN = 10
F_OUT = 10
LANE = 128   # TPU lane width  — pad last dim to this for unmasked vector ops
SUB = 8      # TPU sublane count — full (8,128) tiles for unmasked loads/stores


def _linear_add_kernel(xo_ref, w_ref, o_ref):
    # xo_ref: (SUB, LANE)  row 0 = zero-padded x1, row 1 = zero-padded `other`
    # w_ref:  (LANE, LANE) zero-padded, PRE-TRANSPOSED weight (F_IN x F_OUT corner)
    # o_ref:  (SUB, LANE)  only row 0 is meaningful; full tile written (unmasked vst)
    acc = jnp.dot(xo_ref[...], w_ref[...], preferred_element_type=jnp.float32)
    other_row = xo_ref[pl.ds(1, 1), :]            # (1, LANE), broadcasts over sublanes
    o_ref[...] = (acc + other_row).astype(o_ref.dtype)


def make_padded_weight(weight):
    """weight: (F_OUT, F_IN) PyTorch layout -> (LANE, LANE) transposed + zero-padded.

    Done ONCE at model init (weight is a static parameter), so the hot path never
    rebuilds / re-writes the 64 KiB padded weight.
    """
    w_t = weight.astype(jnp.float32).T  # (F_IN, F_OUT)
    return jnp.zeros((LANE, LANE), jnp.float32).at[:F_IN, :F_OUT].set(w_t)


@jax.jit
def model_forward(x1, w_pad, other):
    """x1: (F_IN,), w_pad: (LANE, LANE) pre-padded weight, other: (F_OUT,) -> (F_OUT,)."""
    # Merge x and `other` into one lane-dense (8,128) operand (2 DMAs total).
    xo = jnp.zeros((SUB, LANE), jnp.float32)
    xo = xo.at[0, :F_IN].set(x1.astype(jnp.float32))
    xo = xo.at[1, :F_OUT].set(other.astype(jnp.float32))

    out = pl.pallas_call(
        _linear_add_kernel,
        out_shape=jax.ShapeDtypeStruct((SUB, LANE), jnp.float32),
        in_specs=[
            pl.BlockSpec(memory_space=pltpu.MemorySpace.VMEM),
            pl.BlockSpec(memory_space=pltpu.MemorySpace.VMEM),
        ],
        out_specs=pl.BlockSpec(memory_space=pltpu.MemorySpace.VMEM),
        cost_estimate=pl.CostEstimate(
            flops=2 * SUB * LANE * LANE,
            transcendentals=0,
            bytes_accessed=(SUB * LANE + LANE * LANE + SUB * LANE) * 4,
        ),
    )(xo, w_pad)

    # Zero-padding the contraction dim keeps the matmul exact; slice the real row.
    return out[0, :F_OUT]


if __name__ == "__main__":
    key = jax.random.PRNGKey(0)
    k_x, k_w = jax.random.split(key)

    # Deterministic "module" parameters / buffers.
    # nn.Linear(10, 10, bias=False).weight has shape (out_features, in_features).
    weight = jax.random.normal(k_w, (F_OUT, F_IN), dtype=jnp.float32) * 0.1
    other = jnp.zeros((F_OUT,), dtype=jnp.float32)  # torch.zeros(10)

    # Pad / transpose the static weight exactly once (outside the hot path).
    w_pad = make_padded_weight(weight)
    jax.block_until_ready(w_pad)

    # Input x1 = torch.randn(10)
    x1 = jax.random.normal(k_x, (F_IN,), dtype=jnp.float32)

    out = model_forward(x1, w_pad, other)
    jax.block_until_ready(out)

    # Reference check in plain JAX.
    ref = x1 @ weight.T + other
    assert out.shape == (F_OUT,)
    assert jnp.allclose(out, ref, atol=1e-5, rtol=1e-5)

    print("KERNEL_OK")
</pallas_src>

<mosaic_0001>
module attributes {stable_mosaic.version = 11 : i64} {
  func.func @_linear_add_kernel(%arg0: memref<8x128xf32, #tpu.memory_space<vmem>>, %arg1: memref<128x128xf32, #tpu.memory_space<vmem>>, %arg2: memref<8x128xf32, #tpu.memory_space<vmem>>) attributes {dimension_semantics = [], scalar_prefetch = 0 : i64, scratch_operands = 0 : i64, tpu.core_type = #tpu.core_type<tc>} {
    %c0 = arith.constant 0 : index
    %c0_0 = arith.constant 0 : index
    %0 = vector.load %arg0[%c0, %c0_0] : memref<8x128xf32, #tpu.memory_space<vmem>>, vector<8x128xf32>
    %c0_1 = arith.constant 0 : index
    %c0_2 = arith.constant 0 : index
    %1 = vector.load %arg1[%c0_1, %c0_2] : memref<128x128xf32, #tpu.memory_space<vmem>>, vector<128x128xf32>
    %cst = arith.constant dense<0.000000e+00> : vector<8x128xf32>
    %2 = tpu.matmul %0, %1, %cst {dimension_numbers = #tpu.dot_dimension_numbers<[1], [0], [0], [1], [0, 0, 1, 1], [], []>} : vector<8x128xf32>, vector<128x128xf32>, vector<8x128xf32> -> vector<8x128xf32>
    %c1 = arith.constant 1 : index
    %c0_3 = arith.constant 0 : index
    %3 = vector.load %arg0[%c1, %c0_3] : memref<8x128xf32, #tpu.memory_space<vmem>>, vector<1x128xf32>
    %4 = vector.broadcast %3 : vector<1x128xf32> to vector<8x128xf32>
    %5 = arith.addf %2, %4 : vector<8x128xf32>
    %c0_4 = arith.constant 0 : index
    %c0_5 = arith.constant 0 : index
    %6 = vector.load %arg2[%c0_4, %c0_5] : memref<8x128xf32, #tpu.memory_space<vmem>>, vector<8x128xf32>
    tpu.vector_store %arg2[%c0_4, %c0_5], %5 {strides = array<i32>} : memref<8x128xf32, #tpu.memory_space<vmem>>, vector<8x128xf32>,
    return
  }
}

</mosaic_0001>

<llo_original>
// kernel: model_forward.1
$region0: #{model_forward.1}
  #allocation0 [shape = 'u32[]', space=smem, size = 0x4, offset = 0x4, fixed_abs, tag = 'smem constant byte address 0x4 - core index']
  #allocation1 [shape = 'u32[144,128]{1,0:T(1,128)}', space=vmem, size = 0x12000, scoped, tag = 'internal scratch']
  %s0 = inlined_call_operand.vmem [shape: f32[8,128], index: 0, kind: input, shape index: {}]
  %s1 = inlined_call_operand.hbm [shape: f32[128,128], index: 1, kind: input, shape index: {}]
  %s2 = inlined_call_operand.vmem [shape: f32[8,128], index: 2, kind: output, shape index: {}]
  %s3 = sld [smem:[#allocation0]]
  $region22: #{model_forward.1} parent=0
    _
  %s5 = ssub.s32 1, %s3
  %s6 = scalar_select 0, %s5, %s3
  $region1: #{model_forward.1} parent=0
    #allocation2 [shape = 'u8[65536]{0}', space=vmem, size = 0x10000, scoped, tag = 'input window, operand 1, single buffered']
    #allocation3 [shape = 's32[1]{0}', space=sflag, size = 0x4, scoped, tag = 'scoped memory for model_forward.1']
    %7 = vsyncpa [#allocation3], 0
    // Predicated region
    $region2: #{model_forward.1} parent=1 // pred_check
      _
    $region3: #{model_forward.1} parent=1 // pred_check_branch
      %9 = sbr.rel (0) target = $region5
    $region4: #{model_forward.1} parent=1 // pred_region
      _
    $region5: #{model_forward.1} parent=1 // pred_fallthru
      _
    // Predicated region
    $region6: #{model_forward.1} parent=1 // pred_check
      _
    $region7: #{model_forward.1} parent=1 // pred_check_branch
      %11 = sbr.rel (0) target = $region9
    $region8: #{model_forward.1} parent=1 // pred_region
      %s13 = ssub.s32 2048, 2048
      %14 = vsyncadd [#allocation3], %s13
      %s15 = sshll.u32 [#allocation2], 4
      %s16 = int_to_ptr.vmem [resolvable:$true] %s15
      %21 = dma.hbm_to_vmem [thread:$0]  %s1, 2048, %s16, [#allocation3], 128, 128, 8
    $region9: #{model_forward.1} parent=1 // pred_fallthru
      _
    // Predicated region
    $region10: #{model_forward.1} parent=1 // pred_check
      _
    $region11: #{model_forward.1} parent=1 // pred_check_branch
      %23 = sbr.rel (0) target = $region13
    $region12: #{model_forward.1} parent=1 // pred_region
      %24 = dma.done [#allocation3], 2048
    $region13: #{model_forward.1} parent=1 // pred_fallthru
      _
    %v25 = vld [vmem:[%s0] sm:$0xff]
    %v26 = vld [vmem:[#allocation2] sm:$0xff]
    %v27 = vld [vmem:[#allocation2 + $0x8] sm:$0xff]
    %v28 = vld [vmem:[#allocation2 + $0x10] sm:$0xff]
    %v29 = vld [vmem:[#allocation2 + $0x18] sm:$0xff]
    %v30 = vld [vmem:[#allocation2 + $0x20] sm:$0xff]
    %v31 = vld [vmem:[#allocation2 + $0x28] sm:$0xff]
    %v32 = vld [vmem:[#allocation2 + $0x30] sm:$0xff]
    %v33 = vld [vmem:[#allocation2 + $0x38] sm:$0xff]
    %v34 = vld [vmem:[#allocation2 + $0x40] sm:$0xff]
    %v35 = vld [vmem:[#allocation2 + $0x48] sm:$0xff]
    %v36 = vld [vmem:[#allocation2 + $0x50] sm:$0xff]
    %v37 = vld [vmem:[#allocation2 + $0x58] sm:$0xff]
    %v38 = vld [vmem:[#allocation2 + $0x60] sm:$0xff]
    %v39 = vld [vmem:[#allocation2 + $0x68] sm:$0xff]
    %v40 = vld [vmem:[#allocation2 + $0x70] sm:$0xff]
    %v41 = vld [vmem:[#allocation2 + $0x78] sm:$0xff]
    %v42 = vld [vmem:[%s0 + $0x1] sm:$0x1]
    %v43 = vlaneseq
    %v44 = vshrl.u32 %v43, 7
    %v45 = vsub.s32 0, %v44
    %v46 = vrot.slane %v42, %v45
    %47 = vmatprep.subr.mxu0 0.0
    %48 = vmatpush1.msra.mxu0 %v26
    %49 = vmatprep.subr.mxu0 0.0
    %50 = vmatpush1.msra.mxu0 %v27
    %51 = vmatprep.subr.mxu0 0.0
    %52 = vmatpush1.msra.mxu0 %v28
    %53 = vmatprep.subr.mxu0 0.0
    %54 = vmatpush1.msra.mxu0 %v29
    %55 = vmatprep.subr.mxu0 0.0
    %56 = vmatpush1.msra.mxu0 %v30
    %57 = vmatprep.subr.mxu0 0.0
    %58 = vmatpush1.msra.mxu0 %v31
    %59 = vmatprep.subr.mxu0 0.0
    %60 = vmatpush1.msra.mxu0 %v32
    %61 = vmatprep.subr.mxu0 0.0
    %62 = vmatpush1.msra.mxu0 %v33
    %63 = vmatprep.subr.mxu0 0.0
    %64 = vmatpush1.msra.mxu0 %v34
    %65 = vmatprep.subr.mxu0 0.0
    %66 = vmatpush1.msra.mxu0 %v35
    %67 = vmatprep.subr.mxu0 0.0
    %68 = vmatpush1.msra.mxu0 %v36
    %69 = vmatprep.subr.mxu0 0.0
    %70 = vmatpush1.msra.mxu0 %v37
    %71 = vmatprep.subr.mxu0 0.0
    %72 = vmatpush1.msra.mxu0 %v38
    %73 = vmatprep.subr.mxu0 0.0
    %74 = vmatpush1.msra.mxu0 %v39
    %75 = vmatprep.subr.mxu0 0.0
    %76 = vmatpush1.msra.mxu0 %v40
    %77 = vmatprep.subr.mxu0 0.0
    %78 = vmatpush1.msra.mxu0 %v41
    %79 = vmatprep.subr.mxu0 0.0
    %80 = vmatpush1.msra.mxu0 0.0
    %81 = vmatprep.subr.mxu0 0.0
    %82 = vmatpush1.msra.mxu0 0.0
    %83 = vmatprep.subr.mxu0 0.0
    %84 = vmatpush1.msra.mxu0 0.0
    %85 = vmatprep.subr.mxu0 0.0
    %86 = vmatpush1.msra.mxu0 0.0
    %87 = vmatprep.subr.mxu0 0.0
    %88 = vmatpush1.msra.mxu0 0.0
    %89 = vmatprep.subr.mxu0 0.0
    %90 = vmatpush1.msra.mxu0 0.0
    %91 = vmatprep.subr.mxu0 0.0
    %92 = vmatpush1.msra.mxu0 0.0
    %93 = vmatprep.subr.mxu0 0.0
    %94 = vmatpush1.msra.mxu0 0.0
    %95 = vmatprep.subr.mxu0 0.0
    %96 = vmatpush1.msra.mxu0 0.0
    %97 = vmatprep.subr.mxu0 0.0
    %98 = vmatpush1.msra.mxu0 0.0
    %99 = vmatprep.subr.mxu0 0.0
    %100 = vmatpush1.msra.mxu0 0.0
    %101 = vmatprep.subr.mxu0 0.0
    %102 = vmatpush1.msra.mxu0 0.0
    %103 = vmatprep.subr.mxu0 0.0
    %104 = vmatpush1.msra.mxu0 0.0
    %105 = vmatprep.subr.mxu0 0.0
    %106 = vmatpush1.msra.mxu0 0.0
    %107 = vmatprep.subr.mxu0 0.0
    %108 = vmatpush1.msra.mxu0 0.0
    %109 = vmatprep.subr.mxu0 0.0
    %110 = vmatpush1.msra.mxu0 0.0
    %111 = vmatprep.mubr.f32.mxu0 0.0
    %112 = vmatmul.mubr.f32.gmra.mrb[0].mxu0 %v25
    %v113 = vpop.f32.mrb[0].mxu0
    %v114 = vadd.f32 %v46, %v113
    %v115 = vpop.f32.mrb[0].mxu0
    %116 = vdwg.mxu0
    %117 = vst [vmem:[%s2] sm:$0xff] %v114
    // Predicated region
    $region14: #{model_forward.1} parent=1 // pred_check
      _
    $region15: #{model_forward.1} parent=1 // pred_check_branch
      %119 = sbr.rel (0) target = $region17
    $region16: #{model_forward.1} parent=1 // pred_region
      _
    $region17: #{model_forward.1} parent=1 // pred_fallthru
      _
    // Predicated region
    $region18: #{model_forward.1} parent=1 // pred_check
      _
    $region19: #{model_forward.1} parent=1 // pred_check_branch
      %121 = sbr.rel (0) target = $region21
    $region20: #{model_forward.1} parent=1 // pred_region
      _
    $region21: #{model_forward.1} parent=1 // pred_fallthru
      _
    %122 = vsyncpa [#allocation3], 1

</llo_original>
